<compile_context>
chip_gen: v7x
topology: tpu7x:2x2x1
jax: 0.10.0
libtpu: 0.0.40
codegen_flags: <defaults>
</compile_context>

<pallas_src>
import jax
import jax.numpy as jnp
from jax.experimental import pallas as pl
from jax.experimental.pallas import tpu as pltpu


def _round_up(n: int, m: int) -> int:
    return ((n + m - 1) // m) * m


def _vmem_cap_bytes() -> int:
    """Physical VMEM per TensorCore; conservative 64 MiB (v7x) if unknown."""
    try:
        info = pltpu.get_tpu_info()
        cap = getattr(info, "vmem_capacity_bytes", None)
        if cap:
            return int(cap)
    except Exception:
        pass
    return 64 << 20


def _encoder_mlp_kernel(x_ref, w1_ref, b1_ref, w2_ref, b2_ref, o_ref):
    """Fused per-batch-tile: o = leaky_relu(x @ W1 + b1) @ W2 + b2."""
    x = x_ref[...].astype(w1_ref.dtype)            # single-dtype MXU path
    h = jnp.dot(x, w1_ref[...], preferred_element_type=jnp.float32)
    h = h + b1_ref[...].astype(jnp.float32)        # (1, H) broadcasts over rows
    h = jnp.where(h > 0, h, 0.01 * h)              # torch LeakyReLU default slope
    h = h.astype(w2_ref.dtype)
    out = jnp.dot(h, w2_ref[...], preferred_element_type=jnp.float32)
    o_ref[...] = (out + b2_ref[...].astype(jnp.float32)).astype(o_ref.dtype)


def _encoder_mlp_kernel_streamed(x_ref, w1_ref, b1_ref, w2_ref, b2_ref, o_ref,
                                 h_acc):
    """Same math, but W1 streams over the feature (reduction) grid axis."""
    k = pl.program_id(1)

    @pl.when(k == 0)
    def _():
        h_acc[...] = jnp.zeros_like(h_acc)

    x = x_ref[...].astype(w1_ref.dtype)
    h_acc[...] += jnp.dot(x, w1_ref[...], preferred_element_type=jnp.float32)

    @pl.when(k == pl.num_programs(1) - 1)
    def _():
        h = h_acc[...] + b1_ref[...].astype(jnp.float32)
        h = jnp.where(h > 0, h, 0.01 * h)
        h = h.astype(w2_ref.dtype)
        out = jnp.dot(h, w2_ref[...], preferred_element_type=jnp.float32)
        o_ref[...] = (out + b2_ref[...].astype(jnp.float32)).astype(o_ref.dtype)


def encoder_forward(x, w1, b1, w2, b2, *,
                    target_stream_bytes: int = 2 << 20,
                    max_block_f: int = 512,
                    force_stream_w1: bool = False):
    """x: (B, F); w1: (F, H); b1: (1, H); w2: (H, L); b2: (1, L) -> (B, L)."""
    B, F = x.shape
    Fw, H = w1.shape
    Hw, L = w2.shape
    assert Fw == F and Hw == H and b1.shape == (1, H) and b2.shape == (1, L)

    def _bpe(a):
        return jnp.dtype(a.dtype).itemsize

    out_dtype = x.dtype
    bpe_x = _bpe(x)
    bpe_o = jnp.dtype(out_dtype).itemsize

    vmem_cap = _vmem_cap_bytes()
    vmem_budget = int(0.80 * vmem_cap)

    # Lane-pad the latent dim only when padding does not blow up output bytes;
    # tiny L keeps its true width (masked stores beat 16x extra HBM traffic).
    Lp_full = _round_up(L, 128)
    Lp = Lp_full if Lp_full <= 2 * L else L
    w2_p = w2 if Lp == L else jnp.pad(w2, ((0, 0), (0, Lp - L)))
    b2_p = b2 if Lp == L else jnp.pad(b2, ((0, 0), (0, Lp - L)))

    # Can the weights stay fully VMEM-resident across the batch grid?
    resident_w_bytes = (F * H * _bpe(w1) + H * _bpe(b1)
                        + H * Lp * _bpe(w2_p) + Lp * _bpe(b2_p))
    stream_w1 = force_stream_w1 or (resident_w_bytes > int(0.45 * vmem_cap))

    x_p, w1_p = x, w1
    if stream_w1:
        # Feature axis becomes a reduction grid axis; zero-pad it so ragged
        # K-blocks cannot contribute garbage to the accumulator.
        Fp = _round_up(F, 128)
        if Fp != F:
            x_p = jnp.pad(x, ((0, 0), (0, Fp - F)))
            w1_p = jnp.pad(w1, ((0, Fp - F), (0, 0)))
        TF = max(128, (min(max_block_f, Fp) // 128) * 128)
        while Fp % TF:
            TF -= 128
        nf = Fp // TF
    else:
        Fp, TF, nf = F, F, 1

    # Batch tile: target ~target_stream_bytes of streamed x+out per grid step,
    # clamp to the VMEM budget, and keep >= 2 batch steps for v7x megacore.
    row_mult = 16 if x.dtype == jnp.bfloat16 else 8
    row_stream = TF * bpe_x + Lp * bpe_o
    tb_target = max(row_mult, target_stream_bytes // max(1, row_stream))

    per_row_vmem = 2 * TF * bpe_x + 2 * Lp * bpe_o + H * 4 + Lp * 4
    if stream_w1:
        per_row_vmem += H * 4  # f32 accumulator scratch
        resident_vmem = (2 * (H * _bpe(b1) + H * Lp * _bpe(w2_p) + Lp * _bpe(b2_p))
                         + 2 * TF * H * _bpe(w1_p))
    else:
        resident_vmem = 2 * resident_w_bytes  # worst case: double-buffered

    head = vmem_budget - resident_vmem
    tb_vmem_max = max(row_mult, head // per_row_vmem) if head > 0 else row_mult

    TB = min(tb_target, tb_vmem_max)
    TB = min(TB, _round_up(pl.cdiv(B, 2), row_mult))   # >= 2 batch steps if B allows
    TB = max(row_mult, (TB // row_mult) * row_mult)
    TB = min(TB, _round_up(B, row_mult))
    nb = pl.cdiv(B, TB)

    vmem_limit = int(1.25 * (resident_vmem + TB * per_row_vmem)) + (2 << 20)
    vmem_limit = min(max(vmem_limit, 32 << 20), vmem_budget)

    cost = pl.CostEstimate(
        flops=2 * B * (Fp * H + H * Lp),
        transcendentals=0,
        bytes_accessed=int(x_p.size * bpe_x + w1_p.size * _bpe(w1_p)
                           + b1.size * _bpe(b1) + w2_p.size * _bpe(w2_p)
                           + b2_p.size * _bpe(b2_p) + B * Lp * bpe_o),
    )

    def _build(single_buffer_weights: bool):
        def wspec(shape, imap):
            if single_buffer_weights:
                return pl.BlockSpec(shape, imap, pipeline_mode=pl.Buffered(1))
            return pl.BlockSpec(shape, imap)

        if not stream_w1:
            grid = (nb,)
            kernel = _encoder_mlp_kernel
            in_specs = [
                pl.BlockSpec((TB, F), lambda i: (i, 0)),      # x tile streams
                wspec((F, H), lambda i: (0, 0)),              # W1 resident
                wspec((1, H), lambda i: (0, 0)),              # b1 resident
                wspec((H, Lp), lambda i: (0, 0)),             # W2 resident
                wspec((1, Lp), lambda i: (0, 0)),             # b2 resident
            ]
            out_spec = pl.BlockSpec((TB, Lp), lambda i: (i, 0))
            scratch = []
            dims = ("parallel",)
        else:
            grid = (nb, nf)
            kernel = _encoder_mlp_kernel_streamed
            in_specs = [
                pl.BlockSpec((TB, TF), lambda i, k: (i, k)),  # x tile streams
                pl.BlockSpec((TF, H), lambda i, k: (k, 0)),   # W1 streams over F
                wspec((1, H), lambda i, k: (0, 0)),
                wspec((H, Lp), lambda i, k: (0, 0)),
                wspec((1, Lp), lambda i, k: (0, 0)),
            ]
            out_spec = pl.BlockSpec((TB, Lp), lambda i, k: (i, 0))
            scratch = [pltpu.VMEM((TB, H), jnp.float32)]
            dims = ("parallel", "arbitrary")

        return pl.pallas_call(
            kernel,
            out_shape=jax.ShapeDtypeStruct((B, Lp), out_dtype),
            grid=grid,
            in_specs=in_specs,
            out_specs=out_spec,
            scratch_shapes=scratch,
            compiler_params=pltpu.CompilerParams(
                dimension_semantics=dims,
                vmem_limit_bytes=vmem_limit,
            ),
            cost_estimate=cost,
        )

    args = (x_p, w1_p, b1, w2_p, b2_p)
    try:
        out_p = _build(single_buffer_weights=True)(*args)
    except Exception:
        # pl.Buffered(1) / pipeline_mode not supported on this build: fall back
        # to default double-buffered resident weights (correctness identical).
        out_p = _build(single_buffer_weights=False)(*args)

    return out_p if Lp == L else out_p[:, :L]


def init_encoder_params(key, feature_size, hidden_size, latent_dims,
                        dtype=jnp.float32):
    """Deterministic synthetic parameters (PyTorch-Linear-style uniform fan-in init)."""
    k1, k2, k3, k4 = jax.random.split(key, 4)
    bound1 = 1.0 / (feature_size ** 0.5)
    bound2 = 1.0 / (hidden_size ** 0.5)
    w1 = jax.random.uniform(k1, (feature_size, hidden_size), dtype,
                            minval=-bound1, maxval=bound1)
    b1 = jax.random.uniform(k2, (1, hidden_size), dtype,
                            minval=-bound1, maxval=bound1)
    w2 = jax.random.uniform(k3, (hidden_size, latent_dims), dtype,
                            minval=-bound2, maxval=bound2)
    b2 = jax.random.uniform(k4, (1, latent_dims), dtype,
                            minval=-bound2, maxval=bound2)
    return w1, b1, w2, b2


if __name__ == "__main__":
    key = jax.random.PRNGKey(0)

    def reference(x, w1, b1, w2, b2):
        h = x @ w1 + b1
        h = jnp.where(h > 0, h, 0.01 * h)
        return h @ w2 + b2

    # 1) Small shapes consistent with the module: Encoder(latent_dims=8,
    #    feature_size=32, layer_sizes=(128,)), batch=8 -> weights stay resident.
    B, F, H, L = 8, 32, 128, 8
    kx, kp, kq = jax.random.split(key, 3)
    x = jax.random.normal(kx, (B, F), dtype=jnp.float32)
    w1, b1, w2, b2 = init_encoder_params(kp, F, H, L)
    out = jax.block_until_ready(encoder_forward(x, w1, b1, w2, b2))
    ref = reference(x, w1, b1, w2, b2)
    assert out.shape == (B, L)
    assert jnp.allclose(out, ref, atol=1e-5, rtol=1e-5)

    # 2) Exercise the weight-streaming (feature-tiled reduction) fallback path.
    B2, F2, H2, L2 = 16, 256, 128, 8
    kx2, kp2 = jax.random.split(kq)
    x2 = jax.random.normal(kx2, (B2, F2), dtype=jnp.float32)
    w1b, b1b, w2b, b2b = init_encoder_params(kp2, F2, H2, L2)
    out2 = jax.block_until_ready(
        encoder_forward(x2, w1b, b1b, w2b, b2b,
                        force_stream_w1=True, max_block_f=128))
    ref2 = reference(x2, w1b, b1b, w2b, b2b)
    assert out2.shape == (B2, L2)
    assert jnp.allclose(out2, ref2, atol=1e-3, rtol=1e-3)

    # TODO(synk): variational=True branch (fc_mu / fc_var twin heads) not wired;
    # it is the same kernel pattern with the head widened to (H, 2L).
    print("KERNEL_OK")
</pallas_src>

<mosaic_0001>
module attributes {stable_mosaic.version = 11 : i64} {
  func.func @_encoder_mlp_kernel(%arg0: i32, %arg1: memref<8x32xf32, #tpu.memory_space<vmem>>, %arg2: memref<32x128xf32, #tpu.memory_space<vmem>>, %arg3: memref<1x128xf32, #tpu.memory_space<vmem>>, %arg4: memref<128x8xf32, #tpu.memory_space<vmem>>, %arg5: memref<1x8xf32, #tpu.memory_space<vmem>>, %arg6: memref<8x8xf32, #tpu.memory_space<vmem>>) attributes {dimension_semantics = [#tpu.dimension_semantics<parallel>], iteration_bounds = array<i64: 1>, scalar_prefetch = 0 : i64, scratch_operands = 0 : i64, tpu.core_type = #tpu.core_type<tc>, window_params = [{transform_indices = @transform_0, window_bounds = array<i64: 8, 32>}, {pipeline_mode = #tpu.pipeline_mode<synchronous>, transform_indices = @transform_1, window_bounds = array<i64: 32, 128>}, {pipeline_mode = #tpu.pipeline_mode<synchronous>, transform_indices = @transform_2, window_bounds = array<i64: 1, 128>}, {pipeline_mode = #tpu.pipeline_mode<synchronous>, transform_indices = @transform_3, window_bounds = array<i64: 128, 8>}, {pipeline_mode = #tpu.pipeline_mode<synchronous>, transform_indices = @transform_4, window_bounds = array<i64: 1, 8>}, {transform_indices = @transform_5, window_bounds = array<i64: 8, 8>}]} {
    %c0 = arith.constant 0 : index
    %c0_0 = arith.constant 0 : index
    %0 = vector.load %arg1[%c0, %c0_0] : memref<8x32xf32, #tpu.memory_space<vmem>>, vector<8x32xf32>
    %c0_1 = arith.constant 0 : index
    %c0_2 = arith.constant 0 : index
    %1 = vector.load %arg2[%c0_1, %c0_2] : memref<32x128xf32, #tpu.memory_space<vmem>>, vector<32x128xf32>
    %cst = arith.constant dense<0.000000e+00> : vector<8x128xf32>
    %2 = tpu.matmul %0, %1, %cst {dimension_numbers = #tpu.dot_dimension_numbers<[1], [0], [0], [1], [0, 0, 1, 1], [], []>} : vector<8x32xf32>, vector<32x128xf32>, vector<8x128xf32> -> vector<8x128xf32>
    %c0_3 = arith.constant 0 : index
    %c0_4 = arith.constant 0 : index
    %3 = vector.load %arg3[%c0_3, %c0_4] : memref<1x128xf32, #tpu.memory_space<vmem>>, vector<1x128xf32>
    %4 = vector.broadcast %3 : vector<1x128xf32> to vector<8x128xf32>
    %5 = arith.addf %2, %4 : vector<8x128xf32>
    %cst_5 = arith.constant 0.000000e+00 : f32
    %6 = vector.broadcast %cst_5 : f32 to vector<8x128xf32>
    %7 = arith.cmpf ogt, %5, %6 : vector<8x128xf32>
    %cst_6 = arith.constant 0.00999999977 : f32
    %8 = vector.broadcast %cst_6 : f32 to vector<8x128xf32>
    %9 = arith.mulf %8, %5 : vector<8x128xf32>
    %10 = arith.select %7, %5, %9 : vector<8x128xi1>, vector<8x128xf32>
    %c0_7 = arith.constant 0 : index
    %c0_8 = arith.constant 0 : index
    %11 = vector.load %arg4[%c0_7, %c0_8] : memref<128x8xf32, #tpu.memory_space<vmem>>, vector<128x8xf32>
    %cst_9 = arith.constant dense<0.000000e+00> : vector<8x8xf32>
    %12 = tpu.matmul %10, %11, %cst_9 {dimension_numbers = #tpu.dot_dimension_numbers<[1], [0], [0], [1], [0, 0, 1, 1], [], []>} : vector<8x128xf32>, vector<128x8xf32>, vector<8x8xf32> -> vector<8x8xf32>
    %c0_10 = arith.constant 0 : index
    %c0_11 = arith.constant 0 : index
    %13 = vector.load %arg5[%c0_10, %c0_11] : memref<1x8xf32, #tpu.memory_space<vmem>>, vector<1x8xf32>
    %14 = vector.broadcast %13 : vector<1x8xf32> to vector<8x8xf32>
    %15 = arith.addf %12, %14 : vector<8x8xf32>
    %c0_12 = arith.constant 0 : index
    %c0_13 = arith.constant 0 : index
    %16 = vector.load %arg6[%c0_12, %c0_13] : memref<8x8xf32, #tpu.memory_space<vmem>>, vector<8x8xf32>
    tpu.vector_store %arg6[%c0_12, %c0_13], %15 {strides = array<i32>} : memref<8x8xf32, #tpu.memory_space<vmem>>, vector<8x8xf32>,
    return
  }
  func.func @transform_0(%arg0: i32) -> (i32, i32) {
    %c0_i32 = arith.constant 0 : i32
    %c0_i32_0 = arith.constant 0 : i32
    return %arg0, %c0_i32 : i32, i32
  }
  func.func @transform_1(%arg0: i32) -> (i32, i32) {
    %c0_i32 = arith.constant 0 : i32
    %c0_i32_0 = arith.constant 0 : i32
    %c0_i32_1 = arith.constant 0 : i32
    return %c0_i32, %c0_i32_0 : i32, i32
  }
  func.func @transform_2(%arg0: i32) -> (i32, i32) {
    %c0_i32 = arith.constant 0 : i32
    %c0_i32_0 = arith.constant 0 : i32
    %c0_i32_1 = arith.constant 0 : i32
    return %c0_i32, %c0_i32_0 : i32, i32
  }
  func.func @transform_3(%arg0: i32) -> (i32, i32) {
    %c0_i32 = arith.constant 0 : i32
    %c0_i32_0 = arith.constant 0 : i32
    %c0_i32_1 = arith.constant 0 : i32
    return %c0_i32, %c0_i32_0 : i32, i32
  }
  func.func @transform_4(%arg0: i32) -> (i32, i32) {
    %c0_i32 = arith.constant 0 : i32
    %c0_i32_0 = arith.constant 0 : i32
    %c0_i32_1 = arith.constant 0 : i32
    return %c0_i32, %c0_i32_0 : i32, i32
  }
  func.func @transform_5(%arg0: i32) -> (i32, i32) {
    %c0_i32 = arith.constant 0 : i32
    %c0_i32_0 = arith.constant 0 : i32
    return %arg0, %c0_i32 : i32, i32
  }
}

module attributes {stable_mosaic.version = 11 : i64} {
  func.func @_encoder_mlp_kernel(%arg0: i32, %arg1: memref<8x32xf32, #tpu.memory_space<vmem>>, %arg2: memref<32x128xf32, #tpu.memory_space<vmem>>, %arg3: memref<1x128xf32, #tpu.memory_space<vmem>>, %arg4: memref<128x8xf32, #tpu.memory_space<vmem>>, %arg5: memref<1x8xf32, #tpu.memory_space<vmem>>, %arg6: memref<8x8xf32, #tpu.memory_space<vmem>>) attributes {dimension_semantics = [#tpu.dimension_semantics<parallel>], iteration_bounds = array<i64: 1>, scalar_prefetch = 0 : i64, scratch_operands = 0 : i64, tpu.core_type = #tpu.core_type<tc>, window_params = [{transform_indices = @transform_0, window_bounds = array<i64: 8, 32>}, {pipeline_mode = #tpu.pipeline_mode<synchronous>, transform_indices = @transform_1, window_bounds = array<i64: 32, 128>}, {pipeline_mode = #tpu.pipeline_mode<synchronous>, transform_indices = @transform_2, window_bounds = array<i64: 1, 128>}, {pipeline_mode = #tpu.pipeline_mode<synchronous>, transform_indices = @transform_3, window_bounds = array<i64: 128, 8>}, {pipeline_mode = #tpu.pipeline_mode<synchronous>, transform_indices = @transform_4, window_bounds = array<i64: 1, 8>}, {transform_indices = @transform_5, window_bounds = array<i64: 8, 8>}]} {
    %c0 = arith.constant 0 : index
    %c0_0 = arith.constant 0 : index
    %0 = vector.load %arg1[%c0, %c0_0] : memref<8x32xf32, #tpu.memory_space<vmem>>, vector<8x32xf32>
    %c0_1 = arith.constant 0 : index
    %c0_2 = arith.constant 0 : index
    %1 = vector.load %arg2[%c0_1, %c0_2] : memref<32x128xf32, #tpu.memory_space<vmem>>, vector<32x128xf32>
    %cst = arith.constant dense<0.000000e+00> : vector<8x128xf32>
    %2 = tpu.matmul %0, %1, %cst {dimension_numbers = #tpu.dot_dimension_numbers<[1], [0], [0], [1], [0, 0, 1, 1], [], []>} : vector<8x32xf32>, vector<32x128xf32>, vector<8x128xf32> -> vector<8x128xf32>
    %c0_3 = arith.constant 0 : index
    %c0_4 = arith.constant 0 : index
    %3 = vector.load %arg3[%c0_3, %c0_4] : memref<1x128xf32, #tpu.memory_space<vmem>>, vector<1x128xf32>
    %4 = vector.broadcast %3 : vector<1x128xf32> to vector<8x128xf32>
    %5 = arith.addf %2, %4 : vector<8x128xf32>
    %cst_5 = arith.constant 0.000000e+00 : f32
    %6 = vector.broadcast %cst_5 : f32 to vector<8x128xf32>
    %7 = arith.cmpf ogt, %5, %6 : vector<8x128xf32>
    %cst_6 = arith.constant 0.00999999977 : f32
    %8 = vector.broadcast %cst_6 : f32 to vector<8x128xf32>
    %9 = arith.mulf %8, %5 : vector<8x128xf32>
    %10 = arith.select %7, %5, %9 : vector<8x128xi1>, vector<8x128xf32>
    %c0_7 = arith.constant 0 : index
    %c0_8 = arith.constant 0 : index
    %11 = vector.load %arg4[%c0_7, %c0_8] : memref<128x8xf32, #tpu.memory_space<vmem>>, vector<128x8xf32>
    %cst_9 = arith.constant dense<0.000000e+00> : vector<8x8xf32>
    %12 = tpu.matmul %10, %11, %cst_9 {dimension_numbers = #tpu.dot_dimension_numbers<[1], [0], [0], [1], [0, 0, 1, 1], [], []>} : vector<8x128xf32>, vector<128x8xf32>, vector<8x8xf32> -> vector<8x8xf32>
    %c0_10 = arith.constant 0 : index
    %c0_11 = arith.constant 0 : index
    %13 = vector.load %arg5[%c0_10, %c0_11] : memref<1x8xf32, #tpu.memory_space<vmem>>, vector<1x8xf32>
    %14 = vector.broadcast %13 : vector<1x8xf32> to vector<8x8xf32>
    %15 = arith.addf %12, %14 : vector<8x8xf32>
    %c0_12 = arith.constant 0 : index
    %c0_13 = arith.constant 0 : index
    %16 = vector.load %arg6[%c0_12, %c0_13] : memref<8x8xf32, #tpu.memory_space<vmem>>, vector<8x8xf32>
    tpu.vector_store %arg6[%c0_12, %c0_13], %15 {strides = array<i32>} : memref<8x8xf32, #tpu.memory_space<vmem>>, vector<8x8xf32>,
    return
  }
  func.func @transform_0(%arg0: i32) -> (i32, i32) {
    %c0_i32 = arith.constant 0 : i32
    %c0_i32_0 = arith.constant 0 : i32
    return %arg0, %c0_i32 : i32, i32
  }
  func.func @transform_1(%arg0: i32) -> (i32, i32) {
    %c0_i32 = arith.constant 0 : i32
    %c0_i32_0 = arith.constant 0 : i32
    %c0_i32_1 = arith.constant 0 : i32
    return %c0_i32, %c0_i32_0 : i32, i32
  }
  func.func @transform_2(%arg0: i32) -> (i32, i32) {
    %c0_i32 = arith.constant 0 : i32
    %c0_i32_0 = arith.constant 0 : i32
    %c0_i32_1 = arith.constant 0 : i32
    return %c0_i32, %c0_i32_0 : i32, i32
  }
  func.func @transform_3(%arg0: i32) -> (i32, i32) {
    %c0_i32 = arith.constant 0 : i32
    %c0_i32_0 = arith.constant 0 : i32
    %c0_i32_1 = arith.constant 0 : i32
    return %c0_i32, %c0_i32_0 : i32, i32
  }
  func.func @transform_4(%arg0: i32) -> (i32, i32) {
    %c0_i32 = arith.constant 0 : i32
    %c0_i32_0 = arith.constant 0 : i32
    %c0_i32_1 = arith.constant 0 : i32
    return %c0_i32, %c0_i32_0 : i32, i32
  }
  func.func @transform_5(%arg0: i32) -> (i32, i32) {
    %c0_i32 = arith.constant 0 : i32
    %c0_i32_0 = arith.constant 0 : i32
    return %arg0, %c0_i32 : i32, i32
  }
}

</mosaic_0001>

<llo_original>
// kernel: tpu_custom_call.1
$region0: #{tpu_custom_call.1}
  #allocation0 [shape = 'u32[]', space=smem, size = 0x4, offset = 0x4, fixed_abs, tag = 'smem constant byte address 0x4 - core index']
  #allocation1 [shape = 'u32[144,128]{1,0:T(1,128)}', space=vmem, size = 0x12000, scoped, tag = 'internal scratch']
  %s0 = inlined_call_operand.vmem [shape: f32[8,32], index: 0, kind: input, shape index: {}]
  %s1 = inlined_call_operand.vmem [shape: f32[32,128], index: 1, kind: input, shape index: {}]
  %s2 = inlined_call_operand.vmem [shape: f32[1,128], index: 2, kind: input, shape index: {}]
  %s3 = inlined_call_operand.vmem [shape: f32[128,8], index: 3, kind: input, shape index: {}]
  %s4 = inlined_call_operand.vmem [shape: f32[1,8], index: 4, kind: input, shape index: {}]
  %s5 = inlined_call_operand.hbm [shape: f32[8,8], index: 5, kind: output, shape index: {}]
  %s6 = sld [smem:[#allocation0]]
  $region30: #{tpu_custom_call.1} parent=0
    _
  %s8 = ssub.s32 1, %s6
  %s9 = scalar_select 0, %s8, %s6
  $region1: #{tpu_custom_call.1} parent=0
    #allocation2 [shape = 'u8[4096]{0}', space=vmem, size = 0x1000, scoped, tag = 'output window, operand 0, single buffered']
    #allocation3 [shape = 's32[1]{0}', space=sflag, size = 0x4, scoped, tag = 'scoped memory for tpu_custom_call.1']
    %10 = vsyncpa [#allocation3], 0
    // Predicated region
    $region2: #{tpu_custom_call.1} parent=1 // pred_check
      _
    $region3: #{tpu_custom_call.1} parent=1 // pred_check_branch
      %12 = sbr.rel (0) target = $region5
    $region4: #{tpu_custom_call.1} parent=1 // pred_region
      _
    $region5: #{tpu_custom_call.1} parent=1 // pred_fallthru
      _
    // Predicated region
    $region6: #{tpu_custom_call.1} parent=1 // pred_check
      _
    $region7: #{tpu_custom_call.1} parent=1 // pred_check_branch
      %14 = sbr.rel (0) target = $region9
    $region8: #{tpu_custom_call.1} parent=1 // pred_region
      _
    $region9: #{tpu_custom_call.1} parent=1 // pred_fallthru
      _
    // Predicated region
    $region10: #{tpu_custom_call.1} parent=1 // pred_check
      _
    $region11: #{tpu_custom_call.1} parent=1 // pred_check_branch
      %16 = sbr.rel (0) target = $region13
    $region12: #{tpu_custom_call.1} parent=1 // pred_region
      _
    $region13: #{tpu_custom_call.1} parent=1 // pred_fallthru
      _
    // Predicated region
    $region14: #{tpu_custom_call.1} parent=1 // pred_check
      _
    $region15: #{tpu_custom_call.1} parent=1 // pred_check_branch
      %18 = sbr.rel (0) target = $region17
    $region16: #{tpu_custom_call.1} parent=1 // pred_region
      _
    $region17: #{tpu_custom_call.1} parent=1 // pred_fallthru
      _
    // Predicated region
    $region18: #{tpu_custom_call.1} parent=1 // pred_check
      _
    $region19: #{tpu_custom_call.1} parent=1 // pred_check_branch
      %20 = sbr.rel (0) target = $region21
    $region20: #{tpu_custom_call.1} parent=1 // pred_region
      _
    $region21: #{tpu_custom_call.1} parent=1 // pred_fallthru
      _
    %v21 = vld [vmem:[%s0] sm:$0xff]
    %v22 = vld [vmem:[%s1] sm:$0xff]
    %v23 = vld [vmem:[%s1 + $0x8] sm:$0xff]
    %v24 = vld [vmem:[%s1 + $0x10] sm:$0xff]
    %v25 = vld [vmem:[%s1 + $0x18] sm:$0xff]
    %v26 = vld [vmem:[%s2] sm:$0x1]
    %v28 = vlaneseq
    %v29 = vshrl.u32 %v28, 7
    %v30 = vsub.s32 0, %v29
    %v31 = vrot.slane %v26, %v30
    %vm33 = vcmask 261120
    %v35 = vsel %vm33, %v21, 0
    %37 = vmatprep.subr.mxu0 0.0
    %38 = vmatpush1.msra.mxu0 %v22
    %39 = vmatprep.subr.mxu0 0.0
    %40 = vmatpush1.msra.mxu0 %v23
    %41 = vmatprep.subr.mxu0 0.0
    %42 = vmatpush1.msra.mxu0 %v24
    %43 = vmatprep.subr.mxu0 0.0
    %44 = vmatpush1.msra.mxu0 %v25
    %45 = vmatprep.subr.mxu0 0.0
    %46 = vmatpush1.msra.mxu0 0.0
    %47 = vmatprep.subr.mxu0 0.0
    %48 = vmatpush1.msra.mxu0 0.0
    %49 = vmatprep.subr.mxu0 0.0
    %50 = vmatpush1.msra.mxu0 0.0
    %51 = vmatprep.subr.mxu0 0.0
    %52 = vmatpush1.msra.mxu0 0.0
    %53 = vmatprep.subr.mxu0 0.0
    %54 = vmatpush1.msra.mxu0 0.0
    %55 = vmatprep.subr.mxu0 0.0
    %56 = vmatpush1.msra.mxu0 0.0
    %57 = vmatprep.subr.mxu0 0.0
    %58 = vmatpush1.msra.mxu0 0.0
    %59 = vmatprep.subr.mxu0 0.0
    %60 = vmatpush1.msra.mxu0 0.0
    %61 = vmatprep.subr.mxu0 0.0
    %62 = vmatpush1.msra.mxu0 0.0
    %63 = vmatprep.subr.mxu0 0.0
    %64 = vmatpush1.msra.mxu0 0.0
    %65 = vmatprep.subr.mxu0 0.0
    %66 = vmatpush1.msra.mxu0 0.0
    %67 = vmatprep.subr.mxu0 0.0
    %68 = vmatpush1.msra.mxu0 0.0
    %69 = vmatprep.subr.mxu0 0.0
    %70 = vmatpush1.msra.mxu0 0.0
    %71 = vmatprep.subr.mxu0 0.0
    %72 = vmatpush1.msra.mxu0 0.0
    %73 = vmatprep.subr.mxu0 0.0
    %74 = vmatpush1.msra.mxu0 0.0
    %75 = vmatprep.subr.mxu0 0.0
    %76 = vmatpush1.msra.mxu0 0.0
    %77 = vmatprep.subr.mxu0 0.0
    %78 = vmatpush1.msra.mxu0 0.0
    %79 = vmatprep.subr.mxu0 0.0
    %80 = vmatpush1.msra.mxu0 0.0
    %81 = vmatprep.subr.mxu0 0.0
    %82 = vmatpush1.msra.mxu0 0.0
    %83 = vmatprep.subr.mxu0 0.0
    %84 = vmatpush1.msra.mxu0 0.0
    %85 = vmatprep.subr.mxu0 0.0
    %86 = vmatpush1.msra.mxu0 0.0
    %87 = vmatprep.subr.mxu0 0.0
    %88 = vmatpush1.msra.mxu0 0.0
    %89 = vmatprep.subr.mxu0 0.0
    %90 = vmatpush1.msra.mxu0 0.0
    %91 = vmatprep.subr.mxu0 0.0
    %92 = vmatpush1.msra.mxu0 0.0
    %93 = vmatprep.subr.mxu0 0.0
    %94 = vmatpush1.msra.mxu0 0.0
    %95 = vmatprep.subr.mxu0 0.0
    %96 = vmatpush1.msra.mxu0 0.0
    %97 = vmatprep.subr.mxu0 0.0
    %98 = vmatpush1.msra.mxu0 0.0
    %99 = vmatprep.subr.mxu0 0.0
    %100 = vmatpush1.msra.mxu0 0.0
    %101 = vmatprep.mubr.f32.mxu0 0.0
    %102 = vmatmul.mubr.f32.gmra.mrb[0].mxu0 %v35
    %v103 = vpop.f32.mrb[0].mxu0
    %v104 = vadd.f32 %v31, %v103
    %v105 = vpop.f32.mrb[0].mxu0
    %106 = vdwg.mxu0
    %vm107 = vcmp.gt.f32.partialorder %v104, 0.0
    %v108 = vmul.f32 %v104, 0.01
    %v109 = vsel %vm107, %v104, %v108
    %v110 = vld [vmem:[%s3] sm:$0xff]
    %v111 = vld [vmem:[%s3 + $0x8] sm:$0xff]
    %v112 = vld [vmem:[%s3 + $0x10] sm:$0xff]
    %v113 = vld [vmem:[%s3 + $0x18] sm:$0xff]
    %v114 = vld [vmem:[%s3 + $0x20] sm:$0xff]
    %v115 = vld [vmem:[%s3 + $0x28] sm:$0xff]
    %v116 = vld [vmem:[%s3 + $0x30] sm:$0xff]
    %v117 = vld [vmem:[%s3 + $0x38] sm:$0xff]
    %v118 = vld [vmem:[%s3 + $0x40] sm:$0xff]
    %v119 = vld [vmem:[%s3 + $0x48] sm:$0xff]
    %v120 = vld [vmem:[%s3 + $0x50] sm:$0xff]
    %v121 = vld [vmem:[%s3 + $0x58] sm:$0xff]
    %v122 = vld [vmem:[%s3 + $0x60] sm:$0xff]
    %v123 = vld [vmem:[%s3 + $0x68] sm:$0xff]
    %v124 = vld [vmem:[%s3 + $0x70] sm:$0xff]
    %v125 = vld [vmem:[%s3 + $0x78] sm:$0xff]
    %v126 = vld [vmem:[%s4] sm:$0x1]
    %v128 = vlaneseq
    %v129 = vshrl.u32 %v128, 7
    %v130 = vsub.s32 0, %v129
    %v131 = vrot.slane %v126, %v130
    %133 = vmatprep.subr.mxu0 0.0
    %134 = vmatpush1.msra.mxu0 %v110
    %135 = vmatprep.subr.mxu0 0.0
    %136 = vmatpush1.msra.mxu0 %v111
    %137 = vmatprep.subr.mxu0 0.0
    %138 = vmatpush1.msra.mxu0 %v112
    %139 = vmatprep.subr.mxu0 0.0
    %140 = vmatpush1.msra.mxu0 %v113
    %141 = vmatprep.subr.mxu0 0.0
    %142 = vmatpush1.msra.mxu0 %v114
    %143 = vmatprep.subr.mxu0 0.0
    %144 = vmatpush1.msra.mxu0 %v115
    %145 = vmatprep.subr.mxu0 0.0
    %146 = vmatpush1.msra.mxu0 %v116
    %147 = vmatprep.subr.mxu0 0.0
    %148 = vmatpush1.msra.mxu0 %v117
    %149 = vmatprep.subr.mxu0 0.0
    %150 = vmatpush1.msra.mxu0 %v118
    %151 = vmatprep.subr.mxu0 0.0
    %152 = vmatpush1.msra.mxu0 %v119
    %153 = vmatprep.subr.mxu0 0.0
    %154 = vmatpush1.msra.mxu0 %v120
    %155 = vmatprep.subr.mxu0 0.0
    %156 = vmatpush1.msra.mxu0 %v121
    %157 = vmatprep.subr.mxu0 0.0
    %158 = vmatpush1.msra.mxu0 %v122
    %159 = vmatprep.subr.mxu0 0.0
    %160 = vmatpush1.msra.mxu0 %v123
    %161 = vmatprep.subr.mxu0 0.0
    %162 = vmatpush1.msra.mxu0 %v124
    %163 = vmatprep.subr.mxu0 0.0
    %164 = vmatpush1.msra.mxu0 %v125
    %165 = vmatprep.subr.mxu0 0.0
    %166 = vmatpush1.msra.mxu0 0.0
    %167 = vmatprep.subr.mxu0 0.0
    %168 = vmatpush1.msra.mxu0 0.0
    %169 = vmatprep.subr.mxu0 0.0
    %170 = vmatpush1.msra.mxu0 0.0
    %171 = vmatprep.subr.mxu0 0.0
    %172 = vmatpush1.msra.mxu0 0.0
    %173 = vmatprep.subr.mxu0 0.0
    %174 = vmatpush1.msra.mxu0 0.0
    %175 = vmatprep.subr.mxu0 0.0
    %176 = vmatpush1.msra.mxu0 0.0
    %177 = vmatprep.subr.mxu0 0.0
    %178 = vmatpush1.msra.mxu0 0.0
    %179 = vmatprep.subr.mxu0 0.0
    %180 = vmatpush1.msra.mxu0 0.0
    %181 = vmatprep.subr.mxu0 0.0
    %182 = vmatpush1.msra.mxu0 0.0
    %183 = vmatprep.subr.mxu0 0.0
    %184 = vmatpush1.msra.mxu0 0.0
    %185 = vmatprep.subr.mxu0 0.0
    %186 = vmatpush1.msra.mxu0 0.0
    %187 = vmatprep.subr.mxu0 0.0
    %188 = vmatpush1.msra.mxu0 0.0
    %189 = vmatprep.subr.mxu0 0.0
    %190 = vmatpush1.msra.mxu0 0.0
    %191 = vmatprep.subr.mxu0 0.0
    %192 = vmatpush1.msra.mxu0 0.0
    %193 = vmatprep.subr.mxu0 0.0
    %194 = vmatpush1.msra.mxu0 0.0
    %195 = vmatprep.subr.mxu0 0.0
    %196 = vmatpush1.msra.mxu0 0.0
    %197 = vmatprep.mubr.f32.mxu0 0.0
    %198 = vmatmul.mubr.f32.gmra.mrb[0].mxu0 %v109
    %v199 = vpop.f32.mrb[0].mxu0
    %v200 = vadd.f32 %v131, %v199
    %v201 = vpop.f32.mrb[0].mxu0
    %202 = vdwg.mxu0
    %vm203 = vcmask 64512
    %204 = vst.msk [vmem:[#allocation2] sm:$0xff] %vm203, %v200
    // Predicated region
    $region22: #{tpu_custom_call.1} parent=1 // pred_check
      _
    $region23: #{tpu_custom_call.1} parent=1 // pred_check_branch
      %206 = sbr.rel (0) target = $region25
    $region24: #{tpu_custom_call.1} parent=1 // pred_region
      %s208 = ssub.s32 128, 128
      %209 = vsyncadd [#allocation3], %s208
      %s211 = sshll.u32 [#allocation2], 4
      %s212 = int_to_ptr.vmem [resolvable:$true] %s211
      %214 = dma.vmem_to_hbm [thread:$0]  %s212, 128, %s5, [#allocation3]
    $region25: #{tpu_custom_call.1} parent=1 // pred_fallthru
      _
    // Predicated region
    $region26: #{tpu_custom_call.1} parent=1 // pred_check
      _
    $region27: #{tpu_custom_call.1} parent=1 // pred_check_branch
      %216 = sbr.rel (0) target = $region29
    $region28: #{tpu_custom_call.1} parent=1 // pred_region
      %217 = dma.done [#allocation3], 128
    $region29: #{tpu_custom_call.1} parent=1 // pred_fallthru
      _
    %218 = vsyncpa [#allocation3], 1

// kernel: tpu_custom_call.1
$region0: #{tpu_custom_call.1}
  #allocation0 [shape = 'u32[]', space=smem, size = 0x4, offset = 0x4, fixed_abs, tag = 'smem constant byte address 0x4 - core index']
  #allocation1 [shape = 'u32[144,128]{1,0:T(1,128)}', space=vmem, size = 0x12000, scoped, tag = 'internal scratch']
  %s0 = inlined_call_operand.vmem [shape: f32[8,32], index: 0, kind: input, shape index: {}]
  %s1 = inlined_call_operand.vmem [shape: f32[32,128], index: 1, kind: input, shape index: {}]
  %s2 = inlined_call_operand.vmem [shape: f32[1,128], index: 2, kind: input, shape index: {}]
  %s3 = inlined_call_operand.vmem [shape: f32[128,8], index: 3, kind: input, shape index: {}]
  %s4 = inlined_call_operand.vmem [shape: f32[1,8], index: 4, kind: input, shape index: {}]
  %s5 = inlined_call_operand.hbm [shape: f32[8,8], index: 5, kind: output, shape index: {}]
  %s6 = sld [smem:[#allocation0]]
  $region30: #{tpu_custom_call.1} parent=0
    _
  %s8 = ssub.s32 1, %s6
  %s9 = scalar_select 0, %s8, %s6
  $region1: #{tpu_custom_call.1} parent=0
    #allocation2 [shape = 'u8[4096]{0}', space=vmem, size = 0x1000, scoped, tag = 'output window, operand 0, single buffered']
    #allocation3 [shape = 's32[1]{0}', space=sflag, size = 0x4, scoped, tag = 'scoped memory for tpu_custom_call.1']
    %10 = vsyncpa [#allocation3], 0
    // Predicated region
    $region2: #{tpu_custom_call.1} parent=1 // pred_check
      _
    $region3: #{tpu_custom_call.1} parent=1 // pred_check_branch
      %12 = sbr.rel (0) target = $region5
    $region4: #{tpu_custom_call.1} parent=1 // pred_region
      _
    $region5: #{tpu_custom_call.1} parent=1 // pred_fallthru
      _
    // Predicated region
    $region6: #{tpu_custom_call.1} parent=1 // pred_check
      _
    $region7: #{tpu_custom_call.1} parent=1 // pred_check_branch
      %14 = sbr.rel (0) target = $region9
    $region8: #{tpu_custom_call.1} parent=1 // pred_region
      _
    $region9: #{tpu_custom_call.1} parent=1 // pred_fallthru
      _
    // Predicated region
    $region10: #{tpu_custom_call.1} parent=1 // pred_check
      _
    $region11: #{tpu_custom_call.1} parent=1 // pred_check_branch
      %16 = sbr.rel (0) target = $region13
    $region12: #{tpu_custom_call.1} parent=1 // pred_region
      _
    $region13: #{tpu_custom_call.1} parent=1 // pred_fallthru
      _
    // Predicated region
    $region14: #{tpu_custom_call.1} parent=1 // pred_check
      _
    $region15: #{tpu_custom_call.1} parent=1 // pred_check_branch
      %18 = sbr.rel (0) target = $region17
    $region16: #{tpu_custom_call.1} parent=1 // pred_region
      _
    $region17: #{tpu_custom_call.1} parent=1 // pred_fallthru
      _
    // Predicated region
    $region18: #{tpu_custom_call.1} parent=1 // pred_check
      _
    $region19: #{tpu_custom_call.1} parent=1 // pred_check_branch
      %20 = sbr.rel (0) target = $region21
    $region20: #{tpu_custom_call.1} parent=1 // pred_region
      _
    $region21: #{tpu_custom_call.1} parent=1 // pred_fallthru
      _
    %v21 = vld [vmem:[%s0] sm:$0xff]
    %v22 = vld [vmem:[%s1] sm:$0xff]
    %v23 = vld [vmem:[%s1 + $0x8] sm:$0xff]
    %v24 = vld [vmem:[%s1 + $0x10] sm:$0xff]
    %v25 = vld [vmem:[%s1 + $0x18] sm:$0xff]
    %v26 = vld [vmem:[%s2] sm:$0x1]
    %v28 = vlaneseq
    %v29 = vshrl.u32 %v28, 7
    %v30 = vsub.s32 0, %v29
    %v31 = vrot.slane %v26, %v30
    %vm33 = vcmask 261120
    %v35 = vsel %vm33, %v21, 0
    %37 = vmatprep.subr.mxu0 0.0
    %38 = vmatpush1.msra.mxu0 %v22
    %39 = vmatprep.subr.mxu0 0.0
    %40 = vmatpush1.msra.mxu0 %v23
    %41 = vmatprep.subr.mxu0 0.0
    %42 = vmatpush1.msra.mxu0 %v24
    %43 = vmatprep.subr.mxu0 0.0
    %44 = vmatpush1.msra.mxu0 %v25
    %45 = vmatprep.subr.mxu0 0.0
    %46 = vmatpush1.msra.mxu0 0.0
    %47 = vmatprep.subr.mxu0 0.0
    %48 = vmatpush1.msra.mxu0 0.0
    %49 = vmatprep.subr.mxu0 0.0
    %50 = vmatpush1.msra.mxu0 0.0
    %51 = vmatprep.subr.mxu0 0.0
    %52 = vmatpush1.msra.mxu0 0.0
    %53 = vmatprep.subr.mxu0 0.0
    %54 = vmatpush1.msra.mxu0 0.0
    %55 = vmatprep.subr.mxu0 0.0
    %56 = vmatpush1.msra.mxu0 0.0
    %57 = vmatprep.subr.mxu0 0.0
    %58 = vmatpush1.msra.mxu0 0.0
    %59 = vmatprep.subr.mxu0 0.0
    %60 = vmatpush1.msra.mxu0 0.0
    %61 = vmatprep.subr.mxu0 0.0
    %62 = vmatpush1.msra.mxu0 0.0
    %63 = vmatprep.subr.mxu0 0.0
    %64 = vmatpush1.msra.mxu0 0.0
    %65 = vmatprep.subr.mxu0 0.0
    %66 = vmatpush1.msra.mxu0 0.0
    %67 = vmatprep.subr.mxu0 0.0
    %68 = vmatpush1.msra.mxu0 0.0
    %69 = vmatprep.subr.mxu0 0.0
    %70 = vmatpush1.msra.mxu0 0.0
    %71 = vmatprep.subr.mxu0 0.0
    %72 = vmatpush1.msra.mxu0 0.0
    %73 = vmatprep.subr.mxu0 0.0
    %74 = vmatpush1.msra.mxu0 0.0
    %75 = vmatprep.subr.mxu0 0.0
    %76 = vmatpush1.msra.mxu0 0.0
    %77 = vmatprep.subr.mxu0 0.0
    %78 = vmatpush1.msra.mxu0 0.0
    %79 = vmatprep.subr.mxu0 0.0
    %80 = vmatpush1.msra.mxu0 0.0
    %81 = vmatprep.subr.mxu0 0.0
    %82 = vmatpush1.msra.mxu0 0.0
    %83 = vmatprep.subr.mxu0 0.0
    %84 = vmatpush1.msra.mxu0 0.0
    %85 = vmatprep.subr.mxu0 0.0
    %86 = vmatpush1.msra.mxu0 0.0
    %87 = vmatprep.subr.mxu0 0.0
    %88 = vmatpush1.msra.mxu0 0.0
    %89 = vmatprep.subr.mxu0 0.0
    %90 = vmatpush1.msra.mxu0 0.0
    %91 = vmatprep.subr.mxu0 0.0
    %92 = vmatpush1.msra.mxu0 0.0
    %93 = vmatprep.subr.mxu0 0.0
    %94 = vmatpush1.msra.mxu0 0.0
    %95 = vmatprep.subr.mxu0 0.0
    %96 = vmatpush1.msra.mxu0 0.0
    %97 = vmatprep.subr.mxu0 0.0
    %98 = vmatpush1.msra.mxu0 0.0
    %99 = vmatprep.subr.mxu0 0.0
    %100 = vmatpush1.msra.mxu0 0.0
    %101 = vmatprep.mubr.f32.mxu0 0.0
    %102 = vmatmul.mubr.f32.gmra.mrb[0].mxu0 %v35
    %v103 = vpop.f32.mrb[0].mxu0
    %v104 = vadd.f32 %v31, %v103
    %v105 = vpop.f32.mrb[0].mxu0
    %106 = vdwg.mxu0
    %vm107 = vcmp.gt.f32.partialorder %v104, 0.0
    %v108 = vmul.f32 %v104, 0.01
    %v109 = vsel %vm107, %v104, %v108
    %v110 = vld [vmem:[%s3] sm:$0xff]
    %v111 = vld [vmem:[%s3 + $0x8] sm:$0xff]
    %v112 = vld [vmem:[%s3 + $0x10] sm:$0xff]
    %v113 = vld [vmem:[%s3 + $0x18] sm:$0xff]
    %v114 = vld [vmem:[%s3 + $0x20] sm:$0xff]
    %v115 = vld [vmem:[%s3 + $0x28] sm:$0xff]
    %v116 = vld [vmem:[%s3 + $0x30] sm:$0xff]
    %v117 = vld [vmem:[%s3 + $0x38] sm:$0xff]
    %v118 = vld [vmem:[%s3 + $0x40] sm:$0xff]
    %v119 = vld [vmem:[%s3 + $0x48] sm:$0xff]
    %v120 = vld [vmem:[%s3 + $0x50] sm:$0xff]
    %v121 = vld [vmem:[%s3 + $0x58] sm:$0xff]
    %v122 = vld [vmem:[%s3 + $0x60] sm:$0xff]
    %v123 = vld [vmem:[%s3 + $0x68] sm:$0xff]
    %v124 = vld [vmem:[%s3 + $0x70] sm:$0xff]
    %v125 = vld [vmem:[%s3 + $0x78] sm:$0xff]
    %v126 = vld [vmem:[%s4] sm:$0x1]
    %v128 = vlaneseq
    %v129 = vshrl.u32 %v128, 7
    %v130 = vsub.s32 0, %v129
    %v131 = vrot.slane %v126, %v130
    %133 = vmatprep.subr.mxu0 0.0
    %134 = vmatpush1.msra.mxu0 %v110
    %135 = vmatprep.subr.mxu0 0.0
    %136 = vmatpush1.msra.mxu0 %v111
    %137 = vmatprep.subr.mxu0 0.0
    %138 = vmatpush1.msra.mxu0 %v112
    %139 = vmatprep.subr.mxu0 0.0
    %140 = vmatpush1.msra.mxu0 %v113
    %141 = vmatprep.subr.mxu0 0.0
    %142 = vmatpush1.msra.mxu0 %v114
    %143 = vmatprep.subr.mxu0 0.0
    %144 = vmatpush1.msra.mxu0 %v115
    %145 = vmatprep.subr.mxu0 0.0
    %146 = vmatpush1.msra.mxu0 %v116
    %147 = vmatprep.subr.mxu0 0.0
    %148 = vmatpush1.msra.mxu0 %v117
    %149 = vmatprep.subr.mxu0 0.0
    %150 = vmatpush1.msra.mxu0 %v118
    %151 = vmatprep.subr.mxu0 0.0
    %152 = vmatpush1.msra.mxu0 %v119
    %153 = vmatprep.subr.mxu0 0.0
    %154 = vmatpush1.msra.mxu0 %v120
    %155 = vmatprep.subr.mxu0 0.0
    %156 = vmatpush1.msra.mxu0 %v121
    %157 = vmatprep.subr.mxu0 0.0
    %158 = vmatpush1.msra.mxu0 %v122
    %159 = vmatprep.subr.mxu0 0.0
    %160 = vmatpush1.msra.mxu0 %v123
    %161 = vmatprep.subr.mxu0 0.0
    %162 = vmatpush1.msra.mxu0 %v124
    %163 = vmatprep.subr.mxu0 0.0
    %164 = vmatpush1.msra.mxu0 %v125
    %165 = vmatprep.subr.mxu0 0.0
    %166 = vmatpush1.msra.mxu0 0.0
    %167 = vmatprep.subr.mxu0 0.0
    %168 = vmatpush1.msra.mxu0 0.0
    %169 = vmatprep.subr.mxu0 0.0
    %170 = vmatpush1.msra.mxu0 0.0
    %171 = vmatprep.subr.mxu0 0.0
    %172 = vmatpush1.msra.mxu0 0.0
    %173 = vmatprep.subr.mxu0 0.0
    %174 = vmatpush1.msra.mxu0 0.0
    %175 = vmatprep.subr.mxu0 0.0
    %176 = vmatpush1.msra.mxu0 0.0
    %177 = vmatprep.subr.mxu0 0.0
    %178 = vmatpush1.msra.mxu0 0.0
    %179 = vmatprep.subr.mxu0 0.0
    %180 = vmatpush1.msra.mxu0 0.0
    %181 = vmatprep.subr.mxu0 0.0
    %182 = vmatpush1.msra.mxu0 0.0
    %183 = vmatprep.subr.mxu0 0.0
    %184 = vmatpush1.msra.mxu0 0.0
    %185 = vmatprep.subr.mxu0 0.0
    %186 = vmatpush1.msra.mxu0 0.0
    %187 = vmatprep.subr.mxu0 0.0
    %188 = vmatpush1.msra.mxu0 0.0
    %189 = vmatprep.subr.mxu0 0.0
    %190 = vmatpush1.msra.mxu0 0.0
    %191 = vmatprep.subr.mxu0 0.0
    %192 = vmatpush1.msra.mxu0 0.0
    %193 = vmatprep.subr.mxu0 0.0
    %194 = vmatpush1.msra.mxu0 0.0
    %195 = vmatprep.subr.mxu0 0.0
    %196 = vmatpush1.msra.mxu0 0.0
    %197 = vmatprep.mubr.f32.mxu0 0.0
    %198 = vmatmul.mubr.f32.gmra.mrb[0].mxu0 %v109
    %v199 = vpop.f32.mrb[0].mxu0
    %v200 = vadd.f32 %v131, %v199
    %v201 = vpop.f32.mrb[0].mxu0
    %202 = vdwg.mxu0
    %vm203 = vcmask 64512
    %204 = vst.msk [vmem:[#allocation2] sm:$0xff] %vm203, %v200
    // Predicated region
    $region22: #{tpu_custom_call.1} parent=1 // pred_check
      _
    $region23: #{tpu_custom_call.1} parent=1 // pred_check_branch
      %206 = sbr.rel (0) target = $region25
    $region24: #{tpu_custom_call.1} parent=1 // pred_region
      %s208 = ssub.s32 128, 128
      %209 = vsyncadd [#allocation3], %s208
      %s211 = sshll.u32 [#allocation2], 4
      %s212 = int_to_ptr.vmem [resolvable:$true] %s211
      %214 = dma.vmem_to_hbm [thread:$0]  %s212, 128, %s5, [#allocation3]
    $region25: #{tpu_custom_call.1} parent=1 // pred_fallthru
      _
    // Predicated region
    $region26: #{tpu_custom_call.1} parent=1 // pred_check
      _
    $region27: #{tpu_custom_call.1} parent=1 // pred_check_branch
      %216 = sbr.rel (0) target = $region29
    $region28: #{tpu_custom_call.1} parent=1 // pred_region
      %217 = dma.done [#allocation3], 128
    $region29: #{tpu_custom_call.1} parent=1 // pred_fallthru
      _
    %218 = vsyncpa [#allocation3], 1

</llo_original>
